<compile_context>
chip_gen: v7x
topology: tpu7x:2x2x1
jax: 0.10.0
libtpu: 0.0.40
codegen_flags: <defaults>
</compile_context>

<pallas_src>
import functools

import jax
import jax.numpy as jnp
from jax.experimental import pallas as pl
from jax.experimental.pallas import tpu as pltpu


def _round_up(x, m):
    return ((x + m - 1) // m) * m


def _vmem_capacity_bytes():
    """Generation-aware VMEM capacity; conservative fallback (v7x per-core)."""
    try:
        return int(pltpu.get_tpu_info().vmem_capacity_bytes)
    except Exception:
        return 64 << 20


def _dwsep_kernel(x_ref, w_ref, out_ref, col_ref, *, kh, kw, wp, l_pad):
    """Fused depthwise-separable conv (weights pre-folded) for one batch block.

    x_ref  : (C, L_ext)        input slab, flattened (NB, H, Wp) on the lane axis
    w_ref  : (OC, KH*KW*C)     folded (pointwise o depthwise) weights, bf16
    out_ref: (OC, L_pad)       lane-dense f32 output slab (L_pad % 128 == 0)
    col_ref: (KH*KW*C, L_pad)  bf16 im2col scratch (matmul RHS)
    """
    c = x_ref.shape[0]
    x = x_ref[...]  # single load; each tap slices the value (review: hoist the x load)

    # ---- im2col: one lane-shifted window per tap, written straight into the
    # matmul layout.  The shift lowers to an XLU lane rotation (same hardware
    # path as pltpu.roll) and is fully lane-dense; no accumulators are kept
    # live across taps, so the vreg live set stays ~one slab.
    for ki in range(kh):
        for kj in range(kw):
            s = ki * wp + kj              # lane shift of this tap
            t = ki * kw + kj              # im2col row block index
            # Row offsets t*c are multiples of c (even here), so the packed
            # bf16 stores stay word-aligned.
            col_ref[t * c:(t + 1) * c, :] = x[:, s:s + l_pad].astype(col_ref.dtype)

    # ---- ONE MXU matmul (bf16 x bf16 -> f32 accumulate), dense unmasked store.
    out_ref[...] = jnp.dot(w_ref[...], col_ref[...],
                           preferred_element_type=jnp.float32)


def fold_weights(w_dw_torch, w_pw_torch, in_channels):
    """Compose depthwise (groups=C) and pointwise 1x1 weights into one dense
    conv weight W_eff of shape (OC, C, KH, KW).  Exact linear composition:
        W_eff[oc, c, ki, kj] = sum_d w_pw[oc, c*depth + d] * w_dw[c*depth + d, 0, ki, kj]
    (PyTorch grouped-conv channel ordering: depthwise out-channel m = c*depth + d.)
    """
    c = in_channels
    oc, cd = w_pw_torch.shape[:2]
    depth = cd // c
    kh, kw = w_dw_torch.shape[-2:]
    wdw = w_dw_torch.reshape(c, depth, kh, kw)
    wpw = w_pw_torch.reshape(oc, c, depth)
    return jnp.einsum("ocd,cdhw->ochw", wpw, wdw)


def dwsep_conv2d(x, w_dw_torch, w_pw_torch, kernel_size, batch_block=None):
    """Forward pass of DepthwiseSeparableConv2D; weights in PyTorch layouts:
         w_dw_torch: (C*depth, 1, KH, KW)   groups = C, padding = (0, KW//2), no bias
         w_pw_torch: (OC, C*depth, 1, 1)    no bias
    """
    n, c, h, w = x.shape
    kh, kw = kernel_size
    oc = w_pw_torch.shape[0]
    pad_w = kw // 2
    oh = h - kh + 1                       # 'valid' in H
    ow = w + 2 * pad_w - kw + 1           # 'same' in W (== W for odd KW)
    wp = w + 2 * pad_w
    k_dim = kh * kw * c
    x_bytes = x.dtype.itemsize

    # ---- batch blocking (generation-aware) ----
    if batch_block is not None:
        nb = max(1, min(n, batch_block))
    else:
        # Per-step footprint: double-buffered x block + bf16 im2col scratch +
        # double-buffered f32 output block.  Keep well under scoped VMEM
        # (v7x: 64 MiB physical / 32 MiB default scoped; v5e/v6e: 128 MiB).
        budget = _vmem_capacity_bytes() // 4
        per_sample = h * wp * (2 * c * x_bytes + k_dim * 2 + 2 * oc * 4)
        nb = max(1, min(n, budget // max(per_sample, 1)))
        # v7x megacore: split into two "parallel" blocks (one per TensorCore)
        # only when a block's MXU work clearly exceeds the ~0.35 us per-step
        # overhead; otherwise a single grid step is fastest on every generation.
        if nb == n and n > 1:
            macs_per_half = oc * k_dim * (pl.cdiv(n, 2) * h * wp)
            if macs_per_half >= 2_000_000:
                nb = pl.cdiv(n, 2)

    nblk = pl.cdiv(n, nb)
    npad = nblk * nb

    # ---- flattened, lane-dense layouts (wrapper-side plumbing, free XLA ops) ----
    l_real = nb * h * wp                        # real flattened columns per block
    l_pad = _round_up(l_real, 128)              # output/scratch width: dense vst
    s_max = (kh - 1) * wp + (kw - 1)            # largest tap shift
    l_ext = _round_up(l_pad + s_max, 128)       # input slab width (covers all shifts)

    # Keep the incoming dtype through the HBM->VMEM DMA (no wrapper upcast).
    x_p = jnp.pad(x, ((0, npad - n), (0, 0), (0, 0), (pad_w, pad_w)))   # (Npad,C,H,Wp)
    x_p = x_p.reshape(nblk, nb, c, h, wp).transpose(0, 2, 1, 3, 4)
    x_p = x_p.reshape(nblk, c, l_real)
    x_ext = jnp.pad(x_p, ((0, 0), (0, 0), (0, l_ext - l_real)))         # (nblk,C,L_ext)

    # Folded weights as the bf16 MXU LHS; column order matches the im2col rows
    # ((ki*KW + kj)*C + c).
    w_eff = fold_weights(w_dw_torch, w_pw_torch, c)                     # (OC,C,KH,KW) f32
    w_mat = w_eff.transpose(0, 2, 3, 1).reshape(oc, k_dim).astype(jnp.bfloat16)

    kernel = functools.partial(_dwsep_kernel, kh=kh, kw=kw, wp=wp, l_pad=l_pad)

    # Explicit per-step VMEM estimate; only override the scoped-VMEM default
    # when actually needed (review: re-derive against v7x's 64 MiB when scaling).
    est = (2 * c * l_ext * x_bytes            # x block, double-buffered
           + 2 * oc * k_dim * 2               # weights (tiny)
           + k_dim * l_pad * 2                # bf16 im2col scratch
           + 2 * oc * l_pad * 4)              # f32 output block, double-buffered
    vmem_limit = None
    if est > (12 << 20):
        vmem_limit = int(min(est * 3 // 2 + (2 << 20),
                             _vmem_capacity_bytes() * 7 // 8))

    flops = 2 * nblk * oc * k_dim * l_pad
    bytes_accessed = int(x_ext.size) * x_bytes + int(w_mat.size) * 2 + nblk * oc * l_pad * 4

    out_flat = pl.pallas_call(
        kernel,
        out_shape=jax.ShapeDtypeStruct((nblk, oc, l_pad), jnp.float32),
        grid=(nblk,),
        in_specs=[
            pl.BlockSpec((None, c, l_ext), lambda b: (b, 0, 0)),
            pl.BlockSpec((oc, k_dim), lambda b: (0, 0)),
        ],
        out_specs=pl.BlockSpec((None, oc, l_pad), lambda b: (b, 0, 0)),
        scratch_shapes=[pltpu.VMEM((k_dim, l_pad), jnp.bfloat16)],
        compiler_params=pltpu.CompilerParams(
            dimension_semantics=("parallel",),
            vmem_limit_bytes=vmem_limit),
        cost_estimate=pl.CostEstimate(flops=flops, transcendentals=0,
                                      bytes_accessed=bytes_accessed),
    )(x_ext, w_mat)

    # (nblk, OC, L_pad) -> (N, OC, OH, OW): strip the lane padding, padded-W
    # window-start columns and valid-H tail rows.  Pure layout plumbing.
    out = out_flat[:, :, :l_real].reshape(nblk, oc, nb, h, wp)
    out = out[:, :, :, :oh, :ow]
    out = out.transpose(0, 2, 1, 3, 4).reshape(npad, oc, oh, ow)[:n]
    return out


def max_norm_renorm(w_dw_torch, w_pw_torch, max_norm=1.0):
    """Reproduces the in-place weight max-norm side effect of the PyTorch
    forward().  It does not affect the forward output, so it stays in JAX glue.
    # TODO(synk): in-place nn.Parameter mutation has no JAX equivalent; the
    # renormalized weights are returned functionally instead."""
    dn = jnp.sqrt(jnp.sum(w_dw_torch.reshape(w_dw_torch.shape[0], -1) ** 2, axis=1))
    pn = jnp.sqrt(jnp.sum(w_pw_torch.reshape(w_pw_torch.shape[0], -1) ** 2, axis=1))
    ds = jnp.minimum(dn / max_norm, 1.0)
    ps = jnp.minimum(pn / max_norm, 1.0)
    new_dw = w_dw_torch / ds[:, None, None, None]
    new_pw = w_pw_torch / ps[:, None, None, None]
    return new_dw, new_pw


if __name__ == "__main__":
    # Small deterministic example consistent with the module:
    # in_channels=4, depth=2, out_channels=8, kernel_size=(3, 5), input NCHW (2, 4, 16, 16)
    N, C, H, W = 2, 4, 16, 16
    DEPTH, OC = 2, 8
    KH, KW = 3, 5

    key = jax.random.PRNGKey(0)
    k1, k2, k3 = jax.random.split(key, 3)
    x = jax.random.normal(k1, (N, C, H, W), jnp.float32)
    w_dw = jax.random.normal(k2, (C * DEPTH, 1, KH, KW), jnp.float32) * 0.1
    w_pw = jax.random.normal(k3, (OC, C * DEPTH, 1, 1), jnp.float32) * 0.1

    out = dwsep_conv2d(x, w_dw, w_pw, (KH, KW))
    out = jax.block_until_ready(out)

    # Parameter side-effect of forward() (weight max-norm renorm), plain JAX glue.
    new_w_dw, new_w_pw = max_norm_renorm(w_dw, w_pw, max_norm=1.0)
    jax.block_until_ready((new_w_dw, new_w_pw))

    pad_w = KW // 2
    OH, OW = H - KH + 1, W

    # Module-level reference: depthwise -> pointwise in f32 (PyTorch semantics).
    dw_ref = jax.lax.conv_general_dilated(
        x, w_dw, window_strides=(1, 1),
        padding=((0, 0), (pad_w, pad_w)),
        dimension_numbers=("NCHW", "OIHW", "NCHW"),
        feature_group_count=C)
    ref_f32 = jax.lax.conv_general_dilated(
        dw_ref, w_pw, window_strides=(1, 1), padding="VALID",
        dimension_numbers=("NCHW", "OIHW", "NCHW"))

    # Algorithm-level reference: same bf16-rounded operands the kernel feeds the
    # MXU, composed into a single f32 conv.  Differences are only accumulation
    # order, so this check is tight.
    w_eff = fold_weights(w_dw, w_pw, C)
    x_q = x.astype(jnp.bfloat16).astype(jnp.float32)
    w_q = w_eff.astype(jnp.bfloat16).astype(jnp.float32)
    ref_exact = jax.lax.conv_general_dilated(
        x_q, w_q, window_strides=(1, 1),
        padding=((0, 0), (pad_w, pad_w)),
        dimension_numbers=("NCHW", "OIHW", "NCHW"))

    assert out.shape == (N, OC, OH, OW), out.shape
    assert jnp.allclose(out, ref_exact, rtol=1e-4, atol=1e-4), \
        float(jnp.max(jnp.abs(out - ref_exact)))
    # Loose check vs the full-f32 module reference (bf16 MXU operands bound the error).
    assert jnp.allclose(out, ref_f32, rtol=2e-2, atol=2e-2), \
        float(jnp.max(jnp.abs(out - ref_f32)))

    print("KERNEL_OK")
</pallas_src>

<mosaic_0001>
module attributes {stable_mosaic.version = 11 : i64} {
  func.func @_dwsep_kernel(%arg0: i32, %arg1: memref<1x4x768xf32, #tpu.memory_space<vmem>>, %arg2: memref<8x60xbf16, #tpu.memory_space<vmem>>, %arg3: memref<1x8x640xf32, #tpu.memory_space<vmem>>, %arg4: memref<60x640xbf16, #tpu.memory_space<vmem>>) attributes {dimension_semantics = [#tpu.dimension_semantics<parallel>], iteration_bounds = array<i64: 1>, scalar_prefetch = 0 : i64, scratch_operands = 1 : i64, tpu.core_type = #tpu.core_type<tc>, window_params = [{transform_indices = @transform_0, window_bounds = array<i64: 1, 4, 768>}, {pipeline_mode = #tpu.pipeline_mode<synchronous>, transform_indices = @transform_1, window_bounds = array<i64: 8, 60>}, {transform_indices = @transform_2, window_bounds = array<i64: 1, 8, 640>}]} {
    %c0 = arith.constant 0 : index
    %c0_0 = arith.constant 0 : index
    %c0_1 = arith.constant 0 : index
    %0 = vector.load %arg1[%c0, %c0_0, %c0_1] : memref<1x4x768xf32, #tpu.memory_space<vmem>>, vector<1x4x768xf32>
    %1 = vector.shape_cast %0 : vector<1x4x768xf32> to vector<4x768xf32>
    %2 = vector.extract_strided_slice %1 {offsets = [0, 0], sizes = [4, 640], strides = [1, 1]} : vector<4x768xf32> to vector<4x640xf32>
    %3 = arith.truncf %2 : vector<4x640xf32> to vector<4x640xbf16>
    %c0_2 = arith.constant 0 : index
    %c0_3 = arith.constant 0 : index
    %4 = vector.load %arg4[%c0_2, %c0_3] : memref<60x640xbf16, #tpu.memory_space<vmem>>, vector<4x640xbf16>
    tpu.vector_store %arg4[%c0_2, %c0_3], %3 {strides = array<i32>} : memref<60x640xbf16, #tpu.memory_space<vmem>>, vector<4x640xbf16>,
    %5 = vector.extract_strided_slice %1 {offsets = [0, 1], sizes = [4, 640], strides = [1, 1]} : vector<4x768xf32> to vector<4x640xf32>
    %6 = arith.truncf %5 : vector<4x640xf32> to vector<4x640xbf16>
    %c4 = arith.constant 4 : index
    %c0_4 = arith.constant 0 : index
    %7 = vector.load %arg4[%c4, %c0_4] : memref<60x640xbf16, #tpu.memory_space<vmem>>, vector<4x640xbf16>
    tpu.vector_store %arg4[%c4, %c0_4], %6 {strides = array<i32>} : memref<60x640xbf16, #tpu.memory_space<vmem>>, vector<4x640xbf16>,
    %8 = vector.extract_strided_slice %1 {offsets = [0, 2], sizes = [4, 640], strides = [1, 1]} : vector<4x768xf32> to vector<4x640xf32>
    %9 = arith.truncf %8 : vector<4x640xf32> to vector<4x640xbf16>
    %c8 = arith.constant 8 : index
    %c0_5 = arith.constant 0 : index
    %10 = vector.load %arg4[%c8, %c0_5] : memref<60x640xbf16, #tpu.memory_space<vmem>>, vector<4x640xbf16>
    tpu.vector_store %arg4[%c8, %c0_5], %9 {strides = array<i32>} : memref<60x640xbf16, #tpu.memory_space<vmem>>, vector<4x640xbf16>,
    %11 = vector.extract_strided_slice %1 {offsets = [0, 3], sizes = [4, 640], strides = [1, 1]} : vector<4x768xf32> to vector<4x640xf32>
    %12 = arith.truncf %11 : vector<4x640xf32> to vector<4x640xbf16>
    %c12 = arith.constant 12 : index
    %c0_6 = arith.constant 0 : index
    %13 = vector.load %arg4[%c12, %c0_6] : memref<60x640xbf16, #tpu.memory_space<vmem>>, vector<4x640xbf16>
    tpu.vector_store %arg4[%c12, %c0_6], %12 {strides = array<i32>} : memref<60x640xbf16, #tpu.memory_space<vmem>>, vector<4x640xbf16>,
    %14 = vector.extract_strided_slice %1 {offsets = [0, 4], sizes = [4, 640], strides = [1, 1]} : vector<4x768xf32> to vector<4x640xf32>
    %15 = arith.truncf %14 : vector<4x640xf32> to vector<4x640xbf16>
    %c16 = arith.constant 16 : index
    %c0_7 = arith.constant 0 : index
    %16 = vector.load %arg4[%c16, %c0_7] : memref<60x640xbf16, #tpu.memory_space<vmem>>, vector<4x640xbf16>
    tpu.vector_store %arg4[%c16, %c0_7], %15 {strides = array<i32>} : memref<60x640xbf16, #tpu.memory_space<vmem>>, vector<4x640xbf16>,
    %17 = vector.extract_strided_slice %1 {offsets = [0, 20], sizes = [4, 640], strides = [1, 1]} : vector<4x768xf32> to vector<4x640xf32>
    %18 = arith.truncf %17 : vector<4x640xf32> to vector<4x640xbf16>
    %c20 = arith.constant 20 : index
    %c0_8 = arith.constant 0 : index
    %19 = vector.load %arg4[%c20, %c0_8] : memref<60x640xbf16, #tpu.memory_space<vmem>>, vector<4x640xbf16>
    tpu.vector_store %arg4[%c20, %c0_8], %18 {strides = array<i32>} : memref<60x640xbf16, #tpu.memory_space<vmem>>, vector<4x640xbf16>,
    %20 = vector.extract_strided_slice %1 {offsets = [0, 21], sizes = [4, 640], strides = [1, 1]} : vector<4x768xf32> to vector<4x640xf32>
    %21 = arith.truncf %20 : vector<4x640xf32> to vector<4x640xbf16>
    %c24 = arith.constant 24 : index
    %c0_9 = arith.constant 0 : index
    %22 = vector.load %arg4[%c24, %c0_9] : memref<60x640xbf16, #tpu.memory_space<vmem>>, vector<4x640xbf16>
    tpu.vector_store %arg4[%c24, %c0_9], %21 {strides = array<i32>} : memref<60x640xbf16, #tpu.memory_space<vmem>>, vector<4x640xbf16>,
    %23 = vector.extract_strided_slice %1 {offsets = [0, 22], sizes = [4, 640], strides = [1, 1]} : vector<4x768xf32> to vector<4x640xf32>
    %24 = arith.truncf %23 : vector<4x640xf32> to vector<4x640xbf16>
    %c28 = arith.constant 28 : index
    %c0_10 = arith.constant 0 : index
    %25 = vector.load %arg4[%c28, %c0_10] : memref<60x640xbf16, #tpu.memory_space<vmem>>, vector<4x640xbf16>
    tpu.vector_store %arg4[%c28, %c0_10], %24 {strides = array<i32>} : memref<60x640xbf16, #tpu.memory_space<vmem>>, vector<4x640xbf16>,
    %26 = vector.extract_strided_slice %1 {offsets = [0, 23], sizes = [4, 640], strides = [1, 1]} : vector<4x768xf32> to vector<4x640xf32>
    %27 = arith.truncf %26 : vector<4x640xf32> to vector<4x640xbf16>
    %c32 = arith.constant 32 : index
    %c0_11 = arith.constant 0 : index
    %28 = vector.load %arg4[%c32, %c0_11] : memref<60x640xbf16, #tpu.memory_space<vmem>>, vector<4x640xbf16>
    tpu.vector_store %arg4[%c32, %c0_11], %27 {strides = array<i32>} : memref<60x640xbf16, #tpu.memory_space<vmem>>, vector<4x640xbf16>,
    %29 = vector.extract_strided_slice %1 {offsets = [0, 24], sizes = [4, 640], strides = [1, 1]} : vector<4x768xf32> to vector<4x640xf32>
    %30 = arith.truncf %29 : vector<4x640xf32> to vector<4x640xbf16>
    %c36 = arith.constant 36 : index
    %c0_12 = arith.constant 0 : index
    %31 = vector.load %arg4[%c36, %c0_12] : memref<60x640xbf16, #tpu.memory_space<vmem>>, vector<4x640xbf16>
    tpu.vector_store %arg4[%c36, %c0_12], %30 {strides = array<i32>} : memref<60x640xbf16, #tpu.memory_space<vmem>>, vector<4x640xbf16>,
    %32 = vector.extract_strided_slice %1 {offsets = [0, 40], sizes = [4, 640], strides = [1, 1]} : vector<4x768xf32> to vector<4x640xf32>
    %33 = arith.truncf %32 : vector<4x640xf32> to vector<4x640xbf16>
    %c40 = arith.constant 40 : index
    %c0_13 = arith.constant 0 : index
    %34 = vector.load %arg4[%c40, %c0_13] : memref<60x640xbf16, #tpu.memory_space<vmem>>, vector<4x640xbf16>
    tpu.vector_store %arg4[%c40, %c0_13], %33 {strides = array<i32>} : memref<60x640xbf16, #tpu.memory_space<vmem>>, vector<4x640xbf16>,
    %35 = vector.extract_strided_slice %1 {offsets = [0, 41], sizes = [4, 640], strides = [1, 1]} : vector<4x768xf32> to vector<4x640xf32>
    %36 = arith.truncf %35 : vector<4x640xf32> to vector<4x640xbf16>
    %c44 = arith.constant 44 : index
    %c0_14 = arith.constant 0 : index
    %37 = vector.load %arg4[%c44, %c0_14] : memref<60x640xbf16, #tpu.memory_space<vmem>>, vector<4x640xbf16>
    tpu.vector_store %arg4[%c44, %c0_14], %36 {strides = array<i32>} : memref<60x640xbf16, #tpu.memory_space<vmem>>, vector<4x640xbf16>,
    %38 = vector.extract_strided_slice %1 {offsets = [0, 42], sizes = [4, 640], strides = [1, 1]} : vector<4x768xf32> to vector<4x640xf32>
    %39 = arith.truncf %38 : vector<4x640xf32> to vector<4x640xbf16>
    %c48 = arith.constant 48 : index
    %c0_15 = arith.constant 0 : index
    %40 = vector.load %arg4[%c48, %c0_15] : memref<60x640xbf16, #tpu.memory_space<vmem>>, vector<4x640xbf16>
    tpu.vector_store %arg4[%c48, %c0_15], %39 {strides = array<i32>} : memref<60x640xbf16, #tpu.memory_space<vmem>>, vector<4x640xbf16>,
    %41 = vector.extract_strided_slice %1 {offsets = [0, 43], sizes = [4, 640], strides = [1, 1]} : vector<4x768xf32> to vector<4x640xf32>
    %42 = arith.truncf %41 : vector<4x640xf32> to vector<4x640xbf16>
    %c52 = arith.constant 52 : index
    %c0_16 = arith.constant 0 : index
    %43 = vector.load %arg4[%c52, %c0_16] : memref<60x640xbf16, #tpu.memory_space<vmem>>, vector<4x640xbf16>
    tpu.vector_store %arg4[%c52, %c0_16], %42 {strides = array<i32>} : memref<60x640xbf16, #tpu.memory_space<vmem>>, vector<4x640xbf16>,
    %44 = vector.extract_strided_slice %1 {offsets = [0, 44], sizes = [4, 640], strides = [1, 1]} : vector<4x768xf32> to vector<4x640xf32>
    %45 = arith.truncf %44 : vector<4x640xf32> to vector<4x640xbf16>
    %c56 = arith.constant 56 : index
    %c0_17 = arith.constant 0 : index
    %46 = vector.load %arg4[%c56, %c0_17] : memref<60x640xbf16, #tpu.memory_space<vmem>>, vector<4x640xbf16>
    tpu.vector_store %arg4[%c56, %c0_17], %45 {strides = array<i32>} : memref<60x640xbf16, #tpu.memory_space<vmem>>, vector<4x640xbf16>,
    %c0_18 = arith.constant 0 : index
    %c0_19 = arith.constant 0 : index
    %47 = vector.load %arg2[%c0_18, %c0_19] : memref<8x60xbf16, #tpu.memory_space<vmem>>, vector<8x60xbf16>
    %c0_20 = arith.constant 0 : index
    %c0_21 = arith.constant 0 : index
    %48 = vector.load %arg4[%c0_20, %c0_21] : memref<60x640xbf16, #tpu.memory_space<vmem>>, vector<60x640xbf16>
    %cst = arith.constant dense<0.000000e+00> : vector<8x640xf32>
    %49 = tpu.matmul %47, %48, %cst {dimension_numbers = #tpu.dot_dimension_numbers<[1], [0], [0], [1], [0, 0, 1, 1], [], []>} : vector<8x60xbf16>, vector<60x640xbf16>, vector<8x640xf32> -> vector<8x640xf32>
    %c0_22 = arith.constant 0 : index
    %c0_23 = arith.constant 0 : index
    %c0_24 = arith.constant 0 : index
    %50 = vector.load %arg3[%c0_22, %c0_23, %c0_24] : memref<1x8x640xf32, #tpu.memory_space<vmem>>, vector<1x8x640xf32>
    %51 = vector.shape_cast %50 : vector<1x8x640xf32> to vector<8x640xf32>
    %52 = vector.shape_cast %49 : vector<8x640xf32> to vector<1x8x640xf32>
    tpu.vector_store %arg3[%c0_22, %c0_23, %c0_24], %52 {strides = array<i32>} : memref<1x8x640xf32, #tpu.memory_space<vmem>>, vector<1x8x640xf32>,
    return
  }
  func.func @transform_0(%arg0: i32) -> (i32, i32, i32) {
    %c0_i32 = arith.constant 0 : i32
    %c0_i32_0 = arith.constant 0 : i32
    %c0_i32_1 = arith.constant 0 : i32
    return %arg0, %c0_i32, %c0_i32_0 : i32, i32, i32
  }
  func.func @transform_1(%arg0: i32) -> (i32, i32) {
    %c0_i32 = arith.constant 0 : i32
    %c0_i32_0 = arith.constant 0 : i32
    %c0_i32_1 = arith.constant 0 : i32
    return %c0_i32, %c0_i32_0 : i32, i32
  }
  func.func @transform_2(%arg0: i32) -> (i32, i32, i32) {
    %c0_i32 = arith.constant 0 : i32
    %c0_i32_0 = arith.constant 0 : i32
    %c0_i32_1 = arith.constant 0 : i32
    return %arg0, %c0_i32, %c0_i32_0 : i32, i32, i32
  }
}

</mosaic_0001>

<llo_original>
// kernel: tpu_custom_call.1
$region0: #{tpu_custom_call.1}
  #allocation0 [shape = 'u32[]', space=smem, size = 0x4, offset = 0x4, fixed_abs, tag = 'smem constant byte address 0x4 - core index']
  #allocation1 [shape = 'u32[144,128]{1,0:T(1,128)}', space=vmem, size = 0x12000, scoped, tag = 'internal scratch']
  #allocation2 [shape = 'bf16[60,640]{1,0:T(8,128)(2,1)}', space=vmem, size = 0x14000, scoped, tag = 'scratch operand']
  %s0 = inlined_call_operand.hbm [shape: f32[1,4,768], index: 0, kind: input, shape index: {}]
  %s1 = inlined_call_operand.hbm [shape: bf16[8,60], index: 1, kind: input, shape index: {}]
  %s2 = inlined_call_operand.hbm [shape: f32[1,8,640], index: 2, kind: output, shape index: {}]
  %s3 = sld [smem:[#allocation0]]
  $region26: #{tpu_custom_call.1} parent=0
    _
  %s5 = ssub.s32 1, %s3
  %s6 = scalar_select 0, %s5, %s3
  $region1: #{tpu_custom_call.1} parent=0
    #allocation3 [shape = 'u8[12288]{0}', space=vmem, size = 0x3000, scoped, tag = 'input window, operand 0, single buffered']
    #allocation4 [shape = 's32[1]{0}', space=sflag, size = 0x4, scoped, tag = 'scoped memory for tpu_custom_call.1']
    #allocation5 [shape = 's32[1]{0}', space=sflag, size = 0x4, scoped, tag = 'scoped memory for tpu_custom_call.1']
    #allocation6 [shape = 'u8[2048]{0}', space=vmem, size = 0x800, scoped, tag = 'input window, operand 1, single buffered']
    #allocation7 [shape = 's32[1]{0}', space=sflag, size = 0x4, scoped, tag = 'scoped memory for tpu_custom_call.1']
    #allocation8 [shape = 'u8[20480]{0}', space=vmem, size = 0x5000, scoped, tag = 'output window, operand 0, single buffered']
    %7 = vsyncpa [#allocation4], 0
    %8 = vsyncpa [#allocation7], 0
    %9 = vsyncpa [#allocation5], 0
    // Predicated region
    $region2: #{tpu_custom_call.1} parent=1 // pred_check
      _
    $region3: #{tpu_custom_call.1} parent=1 // pred_check_branch
      %11 = sbr.rel (0) target = $region5
    $region4: #{tpu_custom_call.1} parent=1 // pred_region
      %s13 = ssub.s32 384, 384
      %14 = vsyncadd [#allocation4], %s13
      %s16 = sshll.u32 [#allocation3], 4
      %s17 = int_to_ptr.vmem [resolvable:$true] %s16
      %19 = dma.hbm_to_vmem [thread:$0]  %s0, 384, %s17, [#allocation4]
    $region5: #{tpu_custom_call.1} parent=1 // pred_fallthru
      _
    // Predicated region
    $region6: #{tpu_custom_call.1} parent=1 // pred_check
      _
    $region7: #{tpu_custom_call.1} parent=1 // pred_check_branch
      %21 = sbr.rel (0) target = $region9
    $region8: #{tpu_custom_call.1} parent=1 // pred_region
      %s23 = ssub.s32 64, 64
      %24 = vsyncadd [#allocation7], %s23
      %s26 = sshll.u32 [#allocation6], 4
      %s27 = int_to_ptr.vmem [resolvable:$true] %s26
      %29 = dma.hbm_to_vmem [thread:$0]  %s1, 64, %s27, [#allocation7]
    $region9: #{tpu_custom_call.1} parent=1 // pred_fallthru
      _
    // Predicated region
    $region10: #{tpu_custom_call.1} parent=1 // pred_check
      _
    $region11: #{tpu_custom_call.1} parent=1 // pred_check_branch
      %31 = sbr.rel (0) target = $region13
    $region12: #{tpu_custom_call.1} parent=1 // pred_region
      %32 = dma.done [#allocation4], 384
    $region13: #{tpu_custom_call.1} parent=1 // pred_fallthru
      _
    // Predicated region
    $region14: #{tpu_custom_call.1} parent=1 // pred_check
      _
    $region15: #{tpu_custom_call.1} parent=1 // pred_check_branch
      %34 = sbr.rel (0) target = $region17
    $region16: #{tpu_custom_call.1} parent=1 // pred_region
      %35 = dma.done [#allocation7], 64
    $region17: #{tpu_custom_call.1} parent=1 // pred_fallthru
      _
    %v37 = vld [vmem:[#allocation3] sm:$0xff]
    %v38 = vld [vmem:[#allocation3 + $0x8] sm:$0xff]
    %v39 = vld [vmem:[#allocation3 + $0x10] sm:$0xff]
    %v43 = vcombine.high %v37, %v37
    %v44 = vcombine.high %v38, %v38
    %v47 = vpack.c.bf16 %v37, %v37
    %v48 = vpack.c.bf16 %v43, %v43
    %v49 = vpack.c.bf16 %v38, %v38
    %v50 = vpack.c.bf16 %v44, %v44
    %v51 = vpack.c.bf16 %v39, %v39
    %v57 = vunpack.c.l.b16 %v47
    %v58 = vunpack.c.l.b16 %v48
    %v59 = vunpack.c.l.b16 %v49
    %v60 = vunpack.c.l.b16 %v50
    %v61 = vunpack.c.l.b16 %v51
    %v62 = vpack.c.b16 %v58, %v57
    %v63 = vpack.c.b16 %v60, %v59
    %v64 = vpack.c.b16 %v61, %v61
    %68 = vst [vmem:[#allocation2] sm:$0x33] %v62
    %69 = vst [vmem:[#allocation2 + $0x8] sm:$0x33] %v63
    %70 = vst [vmem:[#allocation2 + $0x10] sm:$0x3] %v64
    %v71 = vcombine.high %v39, %v39
    %v73 = vpack.c.bf16 %v71, %v71
    %v75 = vunpack.c.l.b16 %v73
    %v76 = vpack.c.b16 %v75, %v61
    %v77 = vrot.slane %v62, 6
    %v78 = vrot.slane %v63, 6
    %v79 = vrot.slane %v76, 6
    %80 = vrot.lane.b32.xlu0 %v77, 127
    %v81 = vpop.permute.xlu0 %80
    %82 = vrot.lane.b32.xlu0 %v78, 127
    %v83 = vpop.permute.xlu0 %82
    %84 = vrot.lane.b32.xlu0 %v79, 127
    %v85 = vpop.permute.xlu0 %84
    %v86 = vrot.slane %v81, 4
    %v87 = vrot.slane %v83, 4
    %v88 = vrot.slane %v85, 4
    %vm89 = vcmask 1043456
    %v90 = vsel %vm89, %v86, %v87
    %vm91 = vcmask 1039360
    %v92 = vsel %vm91, %v81, %v90
    %v93 = vsel %vm89, %v87, %v88
    %v94 = vsel %vm91, %v83, %v93
    %v95 = vsel %vm91, %v85, %v88
    %99 = vst [vmem:[#allocation2] sm:$0xcc] %v92
    %100 = vst [vmem:[#allocation2 + $0x8] sm:$0xcc] %v94
    %101 = vst [vmem:[#allocation2 + $0x10] sm:$0xc] %v95
    %102 = vrot.lane.b32.xlu0 %v62, 126
    %v103 = vpop.permute.xlu0 %102
    %104 = vrot.lane.b32.xlu0 %v63, 126
    %v105 = vpop.permute.xlu0 %104
    %106 = vrot.lane.b32.xlu0 %v76, 126
    %v107 = vpop.permute.xlu0 %106
    %v108 = vrot.slane %v103, 4
    %v109 = vrot.slane %v105, 4
    %v110 = vrot.slane %v107, 4
    %v111 = vsel %vm89, %v108, %v109
    %vm112 = vcmask 1031168
    %v113 = vsel %vm112, %v103, %v111
    %v114 = vsel %vm89, %v109, %v110
    %v115 = vsel %vm112, %v105, %v114
    %v116 = vsel %vm112, %v107, %v110
    %120 = vst [vmem:[#allocation2 + $0x14] sm:$0x33] %v113
    %121 = vst [vmem:[#allocation2 + $0x1c] sm:$0x33] %v115
    %122 = vst [vmem:[#allocation2 + $0x24] sm:$0x3] %v116
    %123 = vrot.lane.b32.xlu0 %v77, 125
    %v124 = vpop.permute.xlu0 %123
    %125 = vrot.lane.b32.xlu0 %v78, 125
    %v126 = vpop.permute.xlu0 %125
    %127 = vrot.lane.b32.xlu0 %v79, 125
    %v128 = vpop.permute.xlu0 %127
    %v129 = vrot.slane %v124, 4
    %v130 = vrot.slane %v126, 4
    %v131 = vrot.slane %v128, 4
    %v132 = vsel %vm89, %v129, %v130
    %vm133 = vcmask 1022976
    %v134 = vsel %vm133, %v124, %v132
    %v135 = vsel %vm89, %v130, %v131
    %v136 = vsel %vm133, %v126, %v135
    %v137 = vsel %vm133, %v128, %v131
    %141 = vst [vmem:[#allocation2 + $0x14] sm:$0xcc] %v134
    %142 = vst [vmem:[#allocation2 + $0x1c] sm:$0xcc] %v136
    %143 = vst [vmem:[#allocation2 + $0x24] sm:$0xc] %v137
    %144 = vrot.lane.b32.xlu0 %v62, 124
    %v145 = vpop.permute.xlu0 %144
    %146 = vrot.lane.b32.xlu0 %v63, 124
    %v147 = vpop.permute.xlu0 %146
    %148 = vrot.lane.b32.xlu0 %v76, 124
    %v149 = vpop.permute.xlu0 %148
    %v150 = vrot.slane %v145, 4
    %v151 = vrot.slane %v147, 4
    %v152 = vrot.slane %v149, 4
    %v153 = vsel %vm89, %v150, %v151
    %vm154 = vcmask 1014784
    %v155 = vsel %vm154, %v145, %v153
    %v156 = vsel %vm89, %v151, %v152
    %v157 = vsel %vm154, %v147, %v156
    %v158 = vsel %vm154, %v149, %v152
    %162 = vst [vmem:[#allocation2 + $0x28] sm:$0x33] %v155
    %163 = vst [vmem:[#allocation2 + $0x30] sm:$0x33] %v157
    %164 = vst [vmem:[#allocation2 + $0x38] sm:$0x3] %v158
    %165 = vrot.lane.b32.xlu0 %v77, 108
    %v166 = vpop.permute.xlu0 %165
    %167 = vrot.lane.b32.xlu0 %v78, 108
    %v168 = vpop.permute.xlu0 %167
    %169 = vrot.lane.b32.xlu0 %v79, 108
    %v170 = vpop.permute.xlu0 %169
    %v171 = vrot.slane %v166, 4
    %v172 = vrot.slane %v168, 4
    %v173 = vrot.slane %v170, 4
    %v174 = vsel %vm89, %v171, %v172
    %vm175 = vcmask 883712
    %v176 = vsel %vm175, %v166, %v174
    %v177 = vsel %vm89, %v172, %v173
    %v178 = vsel %vm175, %v168, %v177
    %v179 = vsel %vm175, %v170, %v173
    %183 = vst [vmem:[#allocation2 + $0x28] sm:$0xcc] %v176
    %184 = vst [vmem:[#allocation2 + $0x30] sm:$0xcc] %v178
    %185 = vst [vmem:[#allocation2 + $0x38] sm:$0xc] %v179
    %186 = vrot.lane.b32.xlu0 %v62, 107
    %v187 = vpop.permute.xlu0 %186
    %188 = vrot.lane.b32.xlu0 %v63, 107
    %v189 = vpop.permute.xlu0 %188
    %190 = vrot.lane.b32.xlu0 %v76, 107
    %v191 = vpop.permute.xlu0 %190
    %v192 = vrot.slane %v187, 4
    %v193 = vrot.slane %v189, 4
    %v194 = vrot.slane %v191, 4
    %v195 = vsel %vm89, %v192, %v193
    %vm196 = vcmask 875520
    %v197 = vsel %vm196, %v187, %v195
    %v198 = vsel %vm89, %v193, %v194
    %v199 = vsel %vm196, %v189, %v198
    %v200 = vsel %vm196, %v191, %v194
    %204 = vst [vmem:[#allocation2 + $0x3c] sm:$0x33] %v197
    %205 = vst [vmem:[#allocation2 + $0x44] sm:$0x33] %v199
    %206 = vst [vmem:[#allocation2 + $0x4c] sm:$0x3] %v200
    %207 = vrot.lane.b32.xlu0 %v77, 106
    %v208 = vpop.permute.xlu0 %207
    %209 = vrot.lane.b32.xlu0 %v78, 106
    %v210 = vpop.permute.xlu0 %209
    %211 = vrot.lane.b32.xlu0 %v79, 106
    %v212 = vpop.permute.xlu0 %211
    %v213 = vrot.slane %v208, 4
    %v214 = vrot.slane %v210, 4
    %v215 = vrot.slane %v212, 4
    %v216 = vsel %vm89, %v213, %v214
    %vm217 = vcmask 867328
    %v218 = vsel %vm217, %v208, %v216
    %v219 = vsel %vm89, %v214, %v215
    %v220 = vsel %vm217, %v210, %v219
    %v221 = vsel %vm217, %v212, %v215
    %225 = vst [vmem:[#allocation2 + $0x3c] sm:$0xcc] %v218
    %226 = vst [vmem:[#allocation2 + $0x44] sm:$0xcc] %v220
    %227 = vst [vmem:[#allocation2 + $0x4c] sm:$0xc] %v221
    %228 = vrot.lane.b32.xlu0 %v62, 105
    %v229 = vpop.permute.xlu0 %228
    %230 = vrot.lane.b32.xlu0 %v63, 105
    %v231 = vpop.permute.xlu0 %230
    %232 = vrot.lane.b32.xlu0 %v76, 105
    %v233 = vpop.permute.xlu0 %232
    %v234 = vrot.slane %v229, 4
    %v235 = vrot.slane %v231, 4
    %v236 = vrot.slane %v233, 4
    %v237 = vsel %vm89, %v234, %v235
    %vm238 = vcmask 859136
    %v239 = vsel %vm238, %v229, %v237
    %v240 = vsel %vm89, %v235, %v236
    %v241 = vsel %vm238, %v231, %v240
    %v242 = vsel %vm238, %v233, %v236
    %246 = vst [vmem:[#allocation2 + $0x50] sm:$0x33] %v239
    %247 = vst [vmem:[#allocation2 + $0x58] sm:$0x33] %v241
    %248 = vst [vmem:[#allocation2 + $0x60] sm:$0x3] %v242
    %249 = vrot.lane.b32.xlu0 %v77, 104
    %v250 = vpop.permute.xlu0 %249
    %251 = vrot.lane.b32.xlu0 %v78, 104
    %v252 = vpop.permute.xlu0 %251
    %253 = vrot.lane.b32.xlu0 %v79, 104
    %v254 = vpop.permute.xlu0 %253
    %v255 = vrot.slane %v250, 4
    %v256 = vrot.slane %v252, 4
    %v257 = vrot.slane %v254, 4
    %v258 = vsel %vm89, %v255, %v256
    %vm259 = vcmask 850944
    %v260 = vsel %vm259, %v250, %v258
    %v261 = vsel %vm89, %v256, %v257
    %v262 = vsel %vm259, %v252, %v261
    %v263 = vsel %vm259, %v254, %v257
    %267 = vst [vmem:[#allocation2 + $0x50] sm:$0xcc] %v260
    %268 = vst [vmem:[#allocation2 + $0x58] sm:$0xcc] %v262
    %269 = vst [vmem:[#allocation2 + $0x60] sm:$0xc] %v263
    %270 = vrot.lane.b32.xlu0 %v62, 88
    %v271 = vpop.permute.xlu0 %270
    %272 = vrot.lane.b32.xlu0 %v63, 88
    %v273 = vpop.permute.xlu0 %272
    %274 = vrot.lane.b32.xlu0 %v76, 88
    %v275 = vpop.permute.xlu0 %274
    %v276 = vrot.slane %v271, 4
    %v277 = vrot.slane %v273, 4
    %v278 = vrot.slane %v275, 4
    %v279 = vsel %vm89, %v276, %v277
    %vm280 = vcmask 719872
    %v281 = vsel %vm280, %v271, %v279
    %v282 = vsel %vm89, %v277, %v278
    %v283 = vsel %vm280, %v273, %v282
    %v284 = vsel %vm280, %v275, %v278
    %288 = vst [vmem:[#allocation2 + $0x64] sm:$0x33] %v281
    %289 = vst [vmem:[#allocation2 + $0x6c] sm:$0x33] %v283
    %290 = vst [vmem:[#allocation2 + $0x74] sm:$0x3] %v284
    %291 = vrot.lane.b32.xlu0 %v77, 87
    %v292 = vpop.permute.xlu0 %291
    %293 = vrot.lane.b32.xlu0 %v78, 87
    %v294 = vpop.permute.xlu0 %293
    %295 = vrot.lane.b32.xlu0 %v79, 87
    %v296 = vpop.permute.xlu0 %295
    %v297 = vrot.slane %v292, 4
    %v298 = vrot.slane %v294, 4
    %v299 = vrot.slane %v296, 4
    %v300 = vsel %vm89, %v297, %v298
    %vm301 = vcmask 711680
    %v302 = vsel %vm301, %v292, %v300
    %v303 = vsel %vm89, %v298, %v299
    %v304 = vsel %vm301, %v294, %v303
    %v305 = vsel %vm301, %v296, %v299
    %309 = vst [vmem:[#allocation2 + $0x64] sm:$0xcc] %v302
    %310 = vst [vmem:[#allocation2 + $0x6c] sm:$0xcc] %v304
    %311 = vst [vmem:[#allocation2 + $0x74] sm:$0xc] %v305
    %312 = vrot.lane.b32.xlu0 %v62, 86
    %v313 = vpop.permute.xlu0 %312
    %314 = vrot.lane.b32.xlu0 %v63, 86
    %v315 = vpop.permute.xlu0 %314
    %316 = vrot.lane.b32.xlu0 %v76, 86
    %v317 = vpop.permute.xlu0 %316
    %v318 = vrot.slane %v313, 4
    %v319 = vrot.slane %v315, 4
    %v320 = vrot.slane %v317, 4
    %v321 = vsel %vm89, %v318, %v319
    %vm322 = vcmask 703488
    %v323 = vsel %vm322, %v313, %v321
    %v324 = vsel %vm89, %v319, %v320
    %v325 = vsel %vm322, %v315, %v324
    %v326 = vsel %vm322, %v317, %v320
    %330 = vst [vmem:[#allocation2 + $0x78] sm:$0x33] %v323
    %331 = vst [vmem:[#allocation2 + $0x80] sm:$0x33] %v325
    %332 = vst [vmem:[#allocation2 + $0x88] sm:$0x3] %v326
    %333 = vrot.lane.b32.xlu0 %v77, 85
    %v334 = vpop.permute.xlu0 %333
    %335 = vrot.lane.b32.xlu0 %v78, 85
    %v336 = vpop.permute.xlu0 %335
    %337 = vrot.lane.b32.xlu0 %v79, 85
    %v338 = vpop.permute.xlu0 %337
    %v339 = vrot.slane %v334, 4
    %v340 = vrot.slane %v336, 4
    %v341 = vrot.slane %v338, 4
    %v342 = vsel %vm89, %v339, %v340
    %vm343 = vcmask 695296
    %v344 = vsel %vm343, %v334, %v342
    %v345 = vsel %vm89, %v340, %v341
    %v346 = vsel %vm343, %v336, %v345
    %v347 = vsel %vm343, %v338, %v341
    %351 = vst [vmem:[#allocation2 + $0x78] sm:$0xcc] %v344
    %352 = vst [vmem:[#allocation2 + $0x80] sm:$0xcc] %v346
    %353 = vst [vmem:[#allocation2 + $0x88] sm:$0xc] %v347
    %354 = vrot.lane.b32.xlu0 %v62, 84
    %v355 = vpop.permute.xlu0 %354
    %356 = vrot.lane.b32.xlu0 %v63, 84
    %v357 = vpop.permute.xlu0 %356
    %358 = vrot.lane.b32.xlu0 %v76, 84
    %v359 = vpop.permute.xlu0 %358
    %v360 = vrot.slane %v355, 4
    %v361 = vrot.slane %v357, 4
    %v362 = vrot.slane %v359, 4
    %v363 = vsel %vm89, %v360, %v361
    %vm364 = vcmask 687104
    %v365 = vsel %vm364, %v355, %v363
    %v366 = vsel %vm89, %v361, %v362
    %v367 = vsel %vm364, %v357, %v366
    %v368 = vsel %vm364, %v359, %v362
    %372 = vst [vmem:[#allocation2 + $0x8c] sm:$0x33] %v365
    %373 = vst [vmem:[#allocation2 + $0x94] sm:$0x33] %v367
    %374 = vst [vmem:[#allocation2 + $0x9c] sm:$0x3] %v368
    %v375 = vld [vmem:[#allocation6] sm:$0xf]
    %v376 = vld [vmem:[#allocation2] sm:$0xff]
    %v377 = vld [vmem:[#allocation2 + $0x8] sm:$0xff]
    %v378 = vld [vmem:[#allocation2 + $0x10] sm:$0xf]
    %v379 = vld [vmem:[#allocation2 + $0x14] sm:$0xff]
    %v380 = vld [vmem:[#allocation2 + $0x1c] sm:$0xff]
    %v381 = vld [vmem:[#allocation2 + $0x24] sm:$0xf]
    %v382 = vld [vmem:[#allocation2 + $0x28] sm:$0xff]
    %v383 = vld [vmem:[#allocation2 + $0x30] sm:$0xff]
    %v384 = vld [vmem:[#allocation2 + $0x38] sm:$0xf]
    %v385 = vld [vmem:[#allocation2 + $0x3c] sm:$0xff]
    %v386 = vld [vmem:[#allocation2 + $0x44] sm:$0xff]
    %v387 = vld [vmem:[#allocation2 + $0x4c] sm:$0xf]
    %v388 = vld [vmem:[#allocation2 + $0x50] sm:$0xff]
    %v389 = vld [vmem:[#allocation2 + $0x58] sm:$0xff]
    %v390 = vld [vmem:[#allocation2 + $0x60] sm:$0xf]
    %v391 = vld [vmem:[#allocation2 + $0x64] sm:$0xff]
    %v392 = vld [vmem:[#allocation2 + $0x6c] sm:$0xff]
    %v393 = vld [vmem:[#allocation2 + $0x74] sm:$0xf]
    %v394 = vld [vmem:[#allocation2 + $0x78] sm:$0xff]
    %v395 = vld [vmem:[#allocation2 + $0x80] sm:$0xff]
    %v396 = vld [vmem:[#allocation2 + $0x88] sm:$0xf]
    %v397 = vld [vmem:[#allocation2 + $0x8c] sm:$0x33]
    %v398 = vld [vmem:[#allocation2 + $0x94] sm:$0x33]
    %v399 = vld [vmem:[#allocation2 + $0x9c] sm:$0x3]
    %v424 = vunpack.c.l.b16 %v376
    %v425 = vunpack.c.h.b16 %v376
    %v426 = vunpack.c.l.b16 %v377
    %v427 = vunpack.c.h.b16 %v377
    %v428 = vunpack.c.l.b16 %v378
    %v429 = vunpack.c.l.b16 %v379
    %v430 = vunpack.c.h.b16 %v379
    %v431 = vunpack.c.l.b16 %v380
    %v432 = vunpack.c.h.b16 %v380
    %v433 = vunpack.c.l.b16 %v381
    %v434 = vunpack.c.l.b16 %v382
    %v435 = vunpack.c.h.b16 %v382
    %v436 = vunpack.c.l.b16 %v383
    %v437 = vunpack.c.h.b16 %v383
    %v438 = vunpack.c.l.b16 %v384
    %v439 = vunpack.c.l.b16 %v385
    %v440 = vunpack.c.h.b16 %v385
    %v441 = vunpack.c.l.b16 %v386
    %v442 = vunpack.c.h.b16 %v386
    %v443 = vunpack.c.l.b16 %v387
    %v444 = vunpack.c.l.b16 %v388
    %v445 = vunpack.c.h.b16 %v388
    %v446 = vunpack.c.l.b16 %v389
    %v447 = vunpack.c.h.b16 %v389
    %v448 = vunpack.c.l.b16 %v390
    %v449 = vunpack.c.l.b16 %v391
    %v450 = vunpack.c.h.b16 %v391
    %v451 = vunpack.c.l.b16 %v392
    %v452 = vunpack.c.h.b16 %v392
    %v453 = vunpack.c.l.b16 %v393
    %v454 = vunpack.c.l.b16 %v394
    %v455 = vunpack.c.h.b16 %v394
    %v456 = vunpack.c.l.b16 %v395
    %v457 = vunpack.c.h.b16 %v395
    %v458 = vunpack.c.l.b16 %v396
    %v459 = vunpack.c.l.b16 %v397
    %v460 = vunpack.c.h.b16 %v397
    %v461 = vunpack.c.l.b16 %v398
    %v462 = vunpack.c.h.b16 %v398
    %v463 = vunpack.c.l.b16 %v399
    %v464 = vpack.c.b16 %v429, %v424
    %v465 = vpack.c.b16 %v430, %v425
    %v466 = vpack.c.b16 %v431, %v426
    %v467 = vpack.c.b16 %v432, %v427
    %v468 = vpack.c.b16 %v433, %v428
    %v469 = vpack.c.b16 %v439, %v434
    %v470 = vpack.c.b16 %v440, %v435
    %v471 = vpack.c.b16 %v441, %v436
    %v472 = vpack.c.b16 %v442, %v437
    %v473 = vpack.c.b16 %v443, %v438
    %v474 = vpack.c.b16 %v449, %v444
    %v475 = vpack.c.b16 %v450, %v445
    %v476 = vpack.c.b16 %v451, %v446
    %v477 = vpack.c.b16 %v452, %v447
    %v478 = vpack.c.b16 %v453, %v448
    %v479 = vpack.c.b16 %v459, %v454
    %v480 = vpack.c.b16 %v460, %v455
    %v481 = vpack.c.b16 %v461, %v456
    %v482 = vpack.c.b16 %v462, %v457
    %v483 = vpack.c.b16 %v463, %v458
    %vm499 = vcmask 490496
    %v501 = vsel %vm499, %v375, 0
    %vm503 = vcmask 1045504
    %v505 = vsel %vm503, %v479, 0
    %v508 = vsel %vm503, %v480, 0
    %v511 = vsel %vm503, %v481, 0
    %v514 = vsel %vm503, %v482, 0
    %v517 = vsel %vm503, %v483, 0
    %519 = vmatprep.subr.bf16.mxu0 %v465
    %520 = vmatpush1.bf16.msra.mxu0 %v464
    %521 = vmatprep.subr.bf16.mxu0 %v470
    %522 = vmatpush1.bf16.msra.mxu0 %v469
    %523 = vmatprep.subr.bf16.mxu0 %v475
    %524 = vmatpush1.bf16.msra.mxu0 %v474
    %525 = vmatprep.subr.bf16.mxu0 %v508
    %526 = vmatpush1.bf16.msra.mxu0 %v505
    %527 = vmatprep.subr.bf16.mxu0 0
    %528 = vmatpush1.bf16.msra.mxu0 0
    %529 = vmatprep.subr.bf16.mxu0 0
    %530 = vmatpush1.bf16.msra.mxu0 0
    %531 = vmatprep.subr.bf16.mxu0 0
    %532 = vmatpush1.bf16.msra.mxu0 0
    %533 = vmatprep.subr.bf16.mxu0 0
    %534 = vmatpush1.bf16.msra.mxu0 0
    %535 = vmatprep.subr.bf16.mxu0 0
    %536 = vmatpush1.bf16.msra.mxu0 0
    %537 = vmatprep.subr.bf16.mxu0 0
    %538 = vmatpush1.bf16.msra.mxu0 0
    %539 = vmatprep.subr.bf16.mxu0 0
    %540 = vmatpush1.bf16.msra.mxu0 0
    %541 = vmatprep.subr.bf16.mxu0 0
    %542 = vmatpush1.bf16.msra.mxu0 0
    %543 = vmatprep.subr.bf16.mxu0 0
    %544 = vmatpush1.bf16.msra.mxu0 0
    %545 = vmatprep.subr.bf16.mxu0 0
    %546 = vmatpush1.bf16.msra.mxu0 0
    %547 = vmatprep.subr.bf16.mxu0 0
    %548 = vmatpush1.bf16.msra.mxu0 0
    %549 = vmatprep.subr.bf16.mxu0 0
    %550 = vmatpush1.bf16.msra.mxu0 0
    %551 = vmatprep.mubr.bf16.mxu0 0
    %552 = vmatmul.mubr.bf16.gmra.mrb[0].mxu0 %v501
    %v553 = vpop.f32.mrb[0].mxu0
    %v554 = vadd.f32 0.0, %v553
    %v555 = vpop.f32.mrb[0].mxu0
    %v556 = vadd.f32 0.0, %v555
    %v557 = vpop.f32.mrb[0].mxu0
    %v558 = vpop.f32.mrb[0].mxu0
    %559 = vdwg.mxu0
    %560 = vmatprep.subr.bf16.mxu0 %v467
    %561 = vmatpush1.bf16.msra.mxu0 %v466
    %562 = vmatprep.subr.bf16.mxu0 %v472
    %563 = vmatpush1.bf16.msra.mxu0 %v471
    %564 = vmatprep.subr.bf16.mxu0 %v477
    %565 = vmatpush1.bf16.msra.mxu0 %v476
    %566 = vmatprep.subr.bf16.mxu0 %v514
    %567 = vmatpush1.bf16.msra.mxu0 %v511
    %568 = vmatprep.subr.bf16.mxu0 0
    %569 = vmatpush1.bf16.msra.mxu0 0
    %570 = vmatprep.subr.bf16.mxu0 0
    %571 = vmatpush1.bf16.msra.mxu0 0
    %572 = vmatprep.subr.bf16.mxu0 0
    %573 = vmatpush1.bf16.msra.mxu0 0
    %574 = vmatprep.subr.bf16.mxu0 0
    %575 = vmatpush1.bf16.msra.mxu0 0
    %576 = vmatprep.subr.bf16.mxu0 0
    %577 = vmatpush1.bf16.msra.mxu0 0
    %578 = vmatprep.subr.bf16.mxu0 0
    %579 = vmatpush1.bf16.msra.mxu0 0
    %580 = vmatprep.subr.bf16.mxu0 0
    %581 = vmatpush1.bf16.msra.mxu0 0
    %582 = vmatprep.subr.bf16.mxu0 0
    %583 = vmatpush1.bf16.msra.mxu0 0
    %584 = vmatprep.subr.bf16.mxu0 0
    %585 = vmatpush1.bf16.msra.mxu0 0
    %586 = vmatprep.subr.bf16.mxu0 0
    %587 = vmatpush1.bf16.msra.mxu0 0
    %588 = vmatprep.subr.bf16.mxu0 0
    %589 = vmatpush1.bf16.msra.mxu0 0
    %590 = vmatprep.subr.bf16.mxu0 0
    %591 = vmatpush1.bf16.msra.mxu0 0
    %592 = vmatprep.mubr.bf16.mxu0 0
    %593 = vmatmul.mubr.bf16.gmra.mrb[0].mxu0 %v501
    %v594 = vpop.f32.mrb[0].mxu0
    %v595 = vadd.f32 0.0, %v594
    %v596 = vpop.f32.mrb[0].mxu0
    %v597 = vadd.f32 0.0, %v596
    %v598 = vpop.f32.mrb[0].mxu0
    %v599 = vpop.f32.mrb[0].mxu0
    %600 = vdwg.mxu0
    %601 = vmatprep.subr.bf16.mxu0 0
    %602 = vmatpush1.bf16.msra.mxu0 %v468
    %603 = vmatprep.subr.bf16.mxu0 0
    %604 = vmatpush1.bf16.msra.mxu0 %v473
    %605 = vmatprep.subr.bf16.mxu0 0
    %606 = vmatpush1.bf16.msra.mxu0 %v478
    %607 = vmatprep.subr.bf16.mxu0 0
    %608 = vmatpush1.bf16.msra.mxu0 %v517
    %609 = vmatprep.subr.bf16.mxu0 0
    %610 = vmatpush1.bf16.msra.mxu0 0
    %611 = vmatprep.subr.bf16.mxu0 0
    %612 = vmatpush1.bf16.msra.mxu0 0
    %613 = vmatprep.subr.bf16.mxu0 0
    %614 = vmatpush1.bf16.msra.mxu0 0
    %615 = vmatprep.subr.bf16.mxu0 0
    %616 = vmatpush1.bf16.msra.mxu0 0
    %617 = vmatprep.subr.bf16.mxu0 0
    %618 = vmatpush1.bf16.msra.mxu0 0
    %619 = vmatprep.subr.bf16.mxu0 0
    %620 = vmatpush1.bf16.msra.mxu0 0
    %621 = vmatprep.subr.bf16.mxu0 0
    %622 = vmatpush1.bf16.msra.mxu0 0
    %623 = vmatprep.subr.bf16.mxu0 0
    %624 = vmatpush1.bf16.msra.mxu0 0
    %625 = vmatprep.subr.bf16.mxu0 0
    %626 = vmatpush1.bf16.msra.mxu0 0
    %627 = vmatprep.subr.bf16.mxu0 0
    %628 = vmatpush1.bf16.msra.mxu0 0
    %629 = vmatprep.subr.bf16.mxu0 0
    %630 = vmatpush1.bf16.msra.mxu0 0
    %631 = vmatprep.subr.bf16.mxu0 0
    %632 = vmatpush1.bf16.msra.mxu0 0
    %633 = vmatprep.mubr.bf16.mxu0 0
    %634 = vmatmul.mubr.bf16.gmra.mrb[0].mxu0 %v501
    %v635 = vpop.f32.mrb[0].mxu0
    %v636 = vadd.f32 0.0, %v635
    %v637 = vpop.f32.mrb[0].mxu0
    %v638 = vpop.f32.mrb[0].mxu0
    %v639 = vpop.f32.mrb[0].mxu0
    %640 = vdwg.mxu0
    %641 = vst [vmem:[#allocation8] sm:$0xff] %v554
    %642 = vst [vmem:[#allocation8 + $0x8] sm:$0xff] %v556
    %643 = vst [vmem:[#allocation8 + $0x10] sm:$0xff] %v595
    %644 = vst [vmem:[#allocation8 + $0x18] sm:$0xff] %v597
    %645 = vst [vmem:[#allocation8 + $0x20] sm:$0xff] %v636
    // Predicated region
    $region18: #{tpu_custom_call.1} parent=1 // pred_check
      _
    $region19: #{tpu_custom_call.1} parent=1 // pred_check_branch
      %647 = sbr.rel (0) target = $region21
    $region20: #{tpu_custom_call.1} parent=1 // pred_region
      %s649 = ssub.s32 640, 640
      %650 = vsyncadd [#allocation5], %s649
      %s652 = sshll.u32 [#allocation8], 4
      %s653 = int_to_ptr.vmem [resolvable:$true] %s652
      %655 = dma.vmem_to_hbm [thread:$0]  %s653, 640, %s2, [#allocation5]
    $region21: #{tpu_custom_call.1} parent=1 // pred_fallthru
      _
    // Predicated region
    $region22: #{tpu_custom_call.1} parent=1 // pred_check
      _
    $region23: #{tpu_custom_call.1} parent=1 // pred_check_branch
      %657 = sbr.rel (0) target = $region25
    $region24: #{tpu_custom_call.1} parent=1 // pred_region
      %658 = dma.done [#allocation5], 640
    $region25: #{tpu_custom_call.1} parent=1 // pred_fallthru
      _
    %659 = vsyncpa [#allocation4], 1
    %660 = vsyncpa [#allocation7], 1
    %661 = vsyncpa [#allocation5], 1

</llo_original>
